<compile_context>
chip_gen: v6e
topology: v6e:2x2x1
jax: 0.10.0
libtpu: 0.0.40
codegen_flags: <defaults>
</compile_context>

<pallas_src>
import functools

import jax
import jax.numpy as jnp
import numpy as np
from jax.experimental import pallas as pl
from jax.experimental.pallas import tpu as pltpu


# ----------------------------- Pallas kernel --------------------------------

def _basic_block_kernel(xin_ref, w1t_ref, b1_ref, w2t_ref, bout_ref, *rest,
                        stride, neg_slope, has_projection):
    """One batch-block per grid step, width-flattened (lane-dense) layout.

    xin_ref  : (B_blk, H+2, W*Cin)        bf16 H-padded input, width-flattened
    w1t_ref  : (3, W*Cin, Wout*Cmid)      bf16 conv1 block-Toeplitz (BN1 scale folded)
    b1_ref   : (1, Wout*Cmid)             f32  BN1 bias
    w2t_ref  : (3, Wout*Cmid, Wout*Cout)  bf16 conv2 block-Toeplitz (BN2 scale folded)
    bout_ref : (1, Wout*Cout)             f32  BN2 bias (+ shortcut BN bias)
    wsct_ref : (W*Cin, Wout*Cout)         bf16 shortcut Toeplitz (projection only)
    out_ref  : (B_blk, Hout, Wout*Cout)   f32
    hpad_ref : VMEM scratch (B_blk, Hout+2, Wout*Cmid) bf16 — per-image H-halo for conv2
    """
    if has_projection:
        wsct_ref, out_ref, hpad_ref = rest
    else:
        out_ref, hpad_ref = rest

    B, Hout, WCout = out_ref.shape
    WCmid = w1t_ref.shape[2]
    M = B * Hout
    f32 = jnp.float32

    def in_rows(dy):
        # Rows {stride*i + dy, i < Hout} of every H-padded image -> (B*Hout, W*Cin).
        if stride == 1:
            r = xin_ref[:, dy:dy + Hout, :]
        else:
            r = xin_ref[:, pl.ds(dy, Hout, stride=stride), :]
        return r.reshape(M, -1)

    r0, r1, r2 = in_rows(0), in_rows(1), in_rows(2)

    # --- conv1 (3x3, stride) + folded BN1 scale: 3 batch-folded matmuls ------
    acc1 = jnp.dot(r0, w1t_ref[0], preferred_element_type=f32)
    acc1 += jnp.dot(r1, w1t_ref[1], preferred_element_type=f32)
    acc1 += jnp.dot(r2, w1t_ref[2], preferred_element_type=f32)
    h = acc1 + b1_ref[...]                        # BN1 bias
    h = jnp.where(h > 0, h, neg_slope * h)        # LeakyReLU
    hb = h.astype(jnp.bfloat16)                   # conv2 operand precision

    # --- per-image H-halo for conv2 (border rows re-zeroed every step: scratch is
    #     per-core, a program_id==0 guard is unsafe if the parallel axis is split) ----
    zrow = jnp.zeros((B, 1, WCmid), hpad_ref.dtype)
    hpad_ref[:, 0:1, :] = zrow
    hpad_ref[:, Hout + 1:Hout + 2, :] = zrow
    hpad_ref[:, 1:Hout + 1, :] = hb.reshape(B, Hout, WCmid)

    # --- conv2 (3x3, stride 1) + folded BN2 scale ------------------------------
    acc2 = jnp.dot(hb, w2t_ref[1], preferred_element_type=f32)   # dy=1: in-register h
    acc2 += jnp.dot(hpad_ref[:, 0:Hout, :].reshape(M, WCmid), w2t_ref[0],
                    preferred_element_type=f32)
    acc2 += jnp.dot(hpad_ref[:, 2:Hout + 2, :].reshape(M, WCmid), w2t_ref[2],
                    preferred_element_type=f32)

    # --- shortcut ---------------------------------------------------------------
    if has_projection:
        # 1x1 conv (+ folded BN scale) over the centre rows of the same input tile.
        acc2 += jnp.dot(r1, wsct_ref[...], preferred_element_type=f32)
    else:
        # Identity (stride==1, Cin==Cout): r1 is the unpadded pixels, lane-aligned.
        acc2 += r1.astype(f32)

    # --- residual add + ReLU ------------------------------------------------------
    y = jnp.maximum(acc2 + bout_ref[...], 0.0)
    out_ref[...] = y.reshape(B, Hout, WCout).astype(out_ref.dtype)


# --------------------------- wrapper-side helpers -----------------------------

def _fold_bn(gamma, beta, mean, var, eps=1e-5):
    scale = gamma / jnp.sqrt(var + eps)
    return scale, beta - mean * scale


def _conv3x3_toeplitz(w_oihw, scale, w_in, w_out, stride):
    """3x3 OIHW weights (+ folded per-out-channel BN scale) -> width-flattened
    block-Toeplitz matrices (3, w_in*Cin, w_out*Cout), one per kernel row dy.
    The W-direction stride AND the pad=1 zero padding are absorbed into the mask."""
    cout, cin = w_oihw.shape[0], w_oihw.shape[1]
    w = jnp.transpose(w_oihw, (2, 3, 1, 0)) * scale[None, None, None, :]  # (dy,dx,ci,co)
    u = jnp.arange(w_in)[:, None]                 # unpadded input column
    j = jnp.arange(w_out)[None, :]                # output column
    dx = u - stride * j + 1                       # kernel tap (pad=1 folded in)
    valid = ((dx >= 0) & (dx <= 2)).astype(w.dtype)
    dxc = jnp.clip(dx, 0, 2)
    mats = []
    for dy in range(3):
        m4 = jnp.take(w[dy], dxc, axis=0) * valid[:, :, None, None]  # (w_in, w_out, ci, co)
        mats.append(jnp.transpose(m4, (0, 2, 1, 3)).reshape(w_in * cin, w_out * cout))
    return jnp.stack(mats)


def _conv1x1_toeplitz(w_oi, scale, w_in, w_out, stride):
    """1x1 (shortcut) weights (+ folded BN scale) -> (w_in*Cin, w_out*Cout)."""
    cout, cin = w_oi.shape
    w = jnp.transpose(w_oi, (1, 0)) * scale[None, :]     # (ci, co)
    u = jnp.arange(w_in)[:, None]
    j = jnp.arange(w_out)[None, :]
    valid = (u == stride * j).astype(w.dtype)
    m4 = w[None, None, :, :] * valid[:, :, None, None]   # (w_in, w_out, ci, co)
    return jnp.transpose(m4, (0, 2, 1, 3)).reshape(w_in * cin, w_out * cout)


# ------------------------------ JAX wrapper ----------------------------------

def basic_block_pallas(x_nchw, params, *, stride=1, batch_block=None):
    """Runs the BasicBlock forward on x (NCHW) with the given parameters."""
    N, Cin, H, W = x_nchw.shape
    Cmid = params["w1"].shape[0]
    Cout = params["w2"].shape[0]
    Hout = (H - 1) // stride + 1
    Wout = (W - 1) // stride + 1
    has_projection = (stride != 1) or (Cin != Cout)
    f32, bf16 = jnp.float32, jnp.bfloat16

    # Matmul M per grid step = batch_block * Hout (target ~256 rows; ~128 suffices on
    # v5e).  Larger N keeps >=2 grid steps per core for pipeline overlap on v7x.
    if batch_block is None:
        batch_block = max(1, min(N, 256 // max(1, Hout)))
    n_blocks = -(-N // batch_block)
    n_pad = n_blocks * batch_block

    # H-padded, width-flattened bf16 input (N_pad, H+2, W*Cin).  Only H is padded; W
    # padding and the W-direction stride live in the Toeplitz masks, so the wrapper
    # makes a single small re-layout pass over the activation.
    x = jnp.transpose(x_nchw, (0, 2, 3, 1)).astype(bf16)          # NHWC
    x = jnp.pad(x, ((0, n_pad - N), (1, 1), (0, 0), (0, 0)))
    xin = x.reshape(n_pad, H + 2, W * Cin)

    s1, b1 = _fold_bn(*params["bn1"])
    s2, b2 = _fold_bn(*params["bn2"])

    w1t = _conv3x3_toeplitz(params["w1"].astype(f32), s1, W, Wout, stride).astype(bf16)
    w2t = _conv3x3_toeplitz(params["w2"].astype(f32), s2, Wout, Wout, 1).astype(bf16)
    b1_flat = jnp.tile(b1, Wout)[None, :].astype(f32)

    bout = b2
    if has_projection:
        ssc, bsc = _fold_bn(*params["bnsc"])
        wsct = _conv1x1_toeplitz(params["wsc"][:, :, 0, 0].astype(f32),
                                 ssc, W, Wout, stride).astype(bf16)
        bout = bout + bsc
    bout_flat = jnp.tile(bout, Wout)[None, :].astype(f32)

    inputs = [xin, w1t, b1_flat, w2t, bout_flat]
    in_specs = [
        pl.BlockSpec((batch_block, H + 2, W * Cin), lambda g: (g, 0, 0)),
        # Grid-invariant operands: constant index_maps, DMA'd once across the grid.
        pl.BlockSpec(w1t.shape, lambda g: (0, 0, 0)),
        pl.BlockSpec(b1_flat.shape, lambda g: (0, 0)),
        pl.BlockSpec(w2t.shape, lambda g: (0, 0, 0)),
        pl.BlockSpec(bout_flat.shape, lambda g: (0, 0)),
    ]
    if has_projection:
        inputs.append(wsct)
        in_specs.append(pl.BlockSpec(wsct.shape, lambda g: (0, 0)))

    kernel = functools.partial(
        _basic_block_kernel, stride=stride, neg_slope=0.01,
        has_projection=has_projection)

    out_flat = pl.pallas_call(
        kernel,
        out_shape=jax.ShapeDtypeStruct((n_pad, Hout, Wout * Cout), f32),
        grid_spec=pltpu.PrefetchScalarGridSpec(
            num_scalar_prefetch=0,
            grid=(n_blocks,),
            in_specs=in_specs,
            out_specs=pl.BlockSpec((batch_block, Hout, Wout * Cout),
                                   lambda g: (g, 0, 0)),
            scratch_shapes=[pltpu.VMEM((batch_block, Hout + 2, Wout * Cmid), bf16)],
        ),
        compiler_params=pltpu.CompilerParams(
            dimension_semantics=("parallel",),
            vmem_limit_bytes=32 * 1024 * 1024),
    )(*inputs)

    out = out_flat[:N].reshape(N, Hout, Wout, Cout)
    return jnp.transpose(out, (0, 3, 1, 2))                        # back to NCHW


# --------------------------- pure-JAX reference -------------------------------

def _ref_forward(x, params, *, stride=1):
    def conv(inp, w, s, p):
        return jax.lax.conv_general_dilated(
            inp, w, (s, s), ((p, p), (p, p)),
            dimension_numbers=("NCHW", "OIHW", "NCHW"))

    s1, b1 = _fold_bn(*params["bn1"])
    s2, b2 = _fold_bn(*params["bn2"])

    h = conv(x, params["w1"], stride, 1)
    h = h * s1[None, :, None, None] + b1[None, :, None, None]
    h = jnp.where(h > 0, h, 0.01 * h)
    r = conv(h, params["w2"], 1, 1)
    r = r * s2[None, :, None, None] + b2[None, :, None, None]

    Cin, Cout = x.shape[1], params["w2"].shape[0]
    if stride != 1 or Cin != Cout:
        ssc, bsc = _fold_bn(*params["bnsc"])
        sc = conv(x, params["wsc"], stride, 0)
        sc = sc * ssc[None, :, None, None] + bsc[None, :, None, None]
    else:
        sc = x
    return jnp.maximum(r + sc, 0.0)


# ----------------------------------- main -------------------------------------

def _bn_params(k, c):
    k1, k2, k3, k4 = jax.random.split(k, 4)
    gamma = 1.0 + 0.1 * jax.random.normal(k1, (c,), jnp.float32)
    beta = 0.1 * jax.random.normal(k2, (c,), jnp.float32)
    mean = 0.1 * jax.random.normal(k3, (c,), jnp.float32)
    var = jax.random.uniform(k4, (c,), jnp.float32, 0.5, 1.5)
    return (gamma, beta, mean, var)


def _make_params(key, cin, cout):
    ks = jax.random.split(key, 6)
    return {
        "w1": 0.1 * jax.random.normal(ks[0], (cout, cin, 3, 3), jnp.float32),
        "bn1": _bn_params(ks[1], cout),
        "w2": 0.1 * jax.random.normal(ks[2], (cout, cout, 3, 3), jnp.float32),
        "bn2": _bn_params(ks[3], cout),
        "wsc": 0.1 * jax.random.normal(ks[4], (cout, cin, 1, 1), jnp.float32),
        "bnsc": _bn_params(ks[5], cout),
    }


if __name__ == "__main__":
    key = jax.random.PRNGKey(0)
    cases = [
        # (name,                      N, Cin, Cout, H,  W,  stride, batch_block)
        ("projection shortcut, s=1",  2, 4,   8,   16, 16, 1, None),
        ("identity shortcut,  s=1",   2, 8,   8,   16, 16, 1, None),
        ("projection shortcut, s=2",  2, 8,   16,  16, 16, 2, None),
        ("proj s=1, multi-step grid", 5, 4,   8,   16, 16, 1, 2),   # odd N -> batch pad
    ]
    for i, (name, N, Cin, Cout, H, W, stride, bblk) in enumerate(cases):
        kx, kp = jax.random.split(jax.random.fold_in(key, i))
        x = jax.random.normal(kx, (N, Cin, H, W), jnp.float32)
        params = _make_params(kp, Cin, Cout)

        out = jax.block_until_ready(
            basic_block_pallas(x, params, stride=stride, batch_block=bblk))
        ref = _ref_forward(x, params, stride=stride)
        # Tolerance reflects bf16 matmul operands (f32 accumulation) vs the f32 ref.
        np.testing.assert_allclose(np.asarray(out), np.asarray(ref),
                                   rtol=3e-2, atol=3e-2,
                                   err_msg=f"mismatch for case: {name}")

    print("KERNEL_OK")
</pallas_src>

<mosaic_0001>
module attributes {stable_mosaic.version = 11 : i64} {
  func.func @_basic_block_kernel(%arg0: i32, %arg1: memref<2x18x64xbf16, #tpu.memory_space<vmem>>, %arg2: memref<3x64x128xbf16, #tpu.memory_space<vmem>>, %arg3: memref<1x128xf32, #tpu.memory_space<vmem>>, %arg4: memref<3x128x128xbf16, #tpu.memory_space<vmem>>, %arg5: memref<1x128xf32, #tpu.memory_space<vmem>>, %arg6: memref<64x128xbf16, #tpu.memory_space<vmem>>, %arg7: memref<2x16x128xf32, #tpu.memory_space<vmem>>, %arg8: memref<2x18x128xbf16, #tpu.memory_space<vmem>>) attributes {dimension_semantics = [#tpu.dimension_semantics<parallel>], iteration_bounds = array<i64: 1>, scalar_prefetch = 0 : i64, scratch_operands = 1 : i64, tpu.core_type = #tpu.core_type<tc>, window_params = [{transform_indices = @transform_0, window_bounds = array<i64: 2, 18, 64>}, {pipeline_mode = #tpu.pipeline_mode<synchronous>, transform_indices = @transform_1, window_bounds = array<i64: 3, 64, 128>}, {pipeline_mode = #tpu.pipeline_mode<synchronous>, transform_indices = @transform_2, window_bounds = array<i64: 1, 128>}, {pipeline_mode = #tpu.pipeline_mode<synchronous>, transform_indices = @transform_3, window_bounds = array<i64: 3, 128, 128>}, {pipeline_mode = #tpu.pipeline_mode<synchronous>, transform_indices = @transform_4, window_bounds = array<i64: 1, 128>}, {pipeline_mode = #tpu.pipeline_mode<synchronous>, transform_indices = @transform_5, window_bounds = array<i64: 64, 128>}, {transform_indices = @transform_6, window_bounds = array<i64: 2, 16, 128>}]} {
    %c0 = arith.constant 0 : index
    %c0_0 = arith.constant 0 : index
    %c0_1 = arith.constant 0 : index
    %0 = vector.load %arg1[%c0, %c0_0, %c0_1] : memref<2x18x64xbf16, #tpu.memory_space<vmem>>, vector<2x16x64xbf16>
    %1 = vector.shape_cast %0 : vector<2x16x64xbf16> to vector<32x64xbf16>
    %c0_2 = arith.constant 0 : index
    %c1 = arith.constant 1 : index
    %c0_3 = arith.constant 0 : index
    %2 = vector.load %arg1[%c0_2, %c1, %c0_3] : memref<2x18x64xbf16, #tpu.memory_space<vmem>>, vector<2x16x64xbf16>
    %3 = vector.shape_cast %2 : vector<2x16x64xbf16> to vector<32x64xbf16>
    %c0_4 = arith.constant 0 : index
    %c2 = arith.constant 2 : index
    %c0_5 = arith.constant 0 : index
    %4 = vector.load %arg1[%c0_4, %c2, %c0_5] : memref<2x18x64xbf16, #tpu.memory_space<vmem>>, vector<2x16x64xbf16>
    %5 = vector.shape_cast %4 : vector<2x16x64xbf16> to vector<32x64xbf16>
    %c0_6 = arith.constant 0 : index
    %c0_7 = arith.constant 0 : index
    %c0_8 = arith.constant 0 : index
    %6 = vector.load %arg2[%c0_6, %c0_7, %c0_8] : memref<3x64x128xbf16, #tpu.memory_space<vmem>>, vector<1x64x128xbf16>
    %7 = vector.shape_cast %6 : vector<1x64x128xbf16> to vector<64x128xbf16>
    %cst = arith.constant dense<0.000000e+00> : vector<32x128xf32>
    %8 = tpu.matmul %1, %7, %cst {dimension_numbers = #tpu.dot_dimension_numbers<[1], [0], [0], [1], [0, 0, 1, 1], [], []>} : vector<32x64xbf16>, vector<64x128xbf16>, vector<32x128xf32> -> vector<32x128xf32>
    %c1_9 = arith.constant 1 : index
    %c0_10 = arith.constant 0 : index
    %c0_11 = arith.constant 0 : index
    %9 = vector.load %arg2[%c1_9, %c0_10, %c0_11] : memref<3x64x128xbf16, #tpu.memory_space<vmem>>, vector<1x64x128xbf16>
    %10 = vector.shape_cast %9 : vector<1x64x128xbf16> to vector<64x128xbf16>
    %cst_12 = arith.constant dense<0.000000e+00> : vector<32x128xf32>
    %11 = tpu.matmul %3, %10, %cst_12 {dimension_numbers = #tpu.dot_dimension_numbers<[1], [0], [0], [1], [0, 0, 1, 1], [], []>} : vector<32x64xbf16>, vector<64x128xbf16>, vector<32x128xf32> -> vector<32x128xf32>
    %12 = arith.addf %8, %11 : vector<32x128xf32>
    %c2_13 = arith.constant 2 : index
    %c0_14 = arith.constant 0 : index
    %c0_15 = arith.constant 0 : index
    %13 = vector.load %arg2[%c2_13, %c0_14, %c0_15] : memref<3x64x128xbf16, #tpu.memory_space<vmem>>, vector<1x64x128xbf16>
    %14 = vector.shape_cast %13 : vector<1x64x128xbf16> to vector<64x128xbf16>
    %cst_16 = arith.constant dense<0.000000e+00> : vector<32x128xf32>
    %15 = tpu.matmul %5, %14, %cst_16 {dimension_numbers = #tpu.dot_dimension_numbers<[1], [0], [0], [1], [0, 0, 1, 1], [], []>} : vector<32x64xbf16>, vector<64x128xbf16>, vector<32x128xf32> -> vector<32x128xf32>
    %16 = arith.addf %12, %15 : vector<32x128xf32>
    %c0_17 = arith.constant 0 : index
    %c0_18 = arith.constant 0 : index
    %17 = vector.load %arg3[%c0_17, %c0_18] : memref<1x128xf32, #tpu.memory_space<vmem>>, vector<1x128xf32>
    %18 = vector.broadcast %17 : vector<1x128xf32> to vector<32x128xf32>
    %19 = arith.addf %16, %18 : vector<32x128xf32>
    %cst_19 = arith.constant 0.000000e+00 : f32
    %20 = vector.broadcast %cst_19 : f32 to vector<32x128xf32>
    %21 = arith.cmpf ogt, %19, %20 : vector<32x128xf32>
    %cst_20 = arith.constant 0.00999999977 : f32
    %22 = vector.broadcast %cst_20 : f32 to vector<32x128xf32>
    %23 = arith.mulf %22, %19 : vector<32x128xf32>
    %24 = arith.select %21, %19, %23 : vector<32x128xi1>, vector<32x128xf32>
    %25 = arith.truncf %24 : vector<32x128xf32> to vector<32x128xbf16>
    %cst_21 = arith.constant 0.000000e+00 : bf16
    %26 = vector.broadcast %cst_21 : bf16 to vector<2x1x128xbf16>
    %c0_22 = arith.constant 0 : index
    %c0_23 = arith.constant 0 : index
    %c0_24 = arith.constant 0 : index
    %27 = vector.load %arg8[%c0_22, %c0_23, %c0_24] : memref<2x18x128xbf16, #tpu.memory_space<vmem>>, vector<2x1x128xbf16>
    tpu.vector_store %arg8[%c0_22, %c0_23, %c0_24], %26 {strides = array<i32>} : memref<2x18x128xbf16, #tpu.memory_space<vmem>>, vector<2x1x128xbf16>,
    %c0_25 = arith.constant 0 : index
    %c17 = arith.constant 17 : index
    %c0_26 = arith.constant 0 : index
    %28 = vector.load %arg8[%c0_25, %c17, %c0_26] : memref<2x18x128xbf16, #tpu.memory_space<vmem>>, vector<2x1x128xbf16>
    tpu.vector_store %arg8[%c0_25, %c17, %c0_26], %26 {strides = array<i32>} : memref<2x18x128xbf16, #tpu.memory_space<vmem>>, vector<2x1x128xbf16>,
    %29 = vector.shape_cast %25 : vector<32x128xbf16> to vector<2x16x128xbf16>
    %c0_27 = arith.constant 0 : index
    %c1_28 = arith.constant 1 : index
    %c0_29 = arith.constant 0 : index
    %30 = vector.load %arg8[%c0_27, %c1_28, %c0_29] : memref<2x18x128xbf16, #tpu.memory_space<vmem>>, vector<2x16x128xbf16>
    tpu.vector_store %arg8[%c0_27, %c1_28, %c0_29], %29 {strides = array<i32>} : memref<2x18x128xbf16, #tpu.memory_space<vmem>>, vector<2x16x128xbf16>,
    %c1_30 = arith.constant 1 : index
    %c0_31 = arith.constant 0 : index
    %c0_32 = arith.constant 0 : index
    %31 = vector.load %arg4[%c1_30, %c0_31, %c0_32] : memref<3x128x128xbf16, #tpu.memory_space<vmem>>, vector<1x128x128xbf16>
    %32 = vector.shape_cast %31 : vector<1x128x128xbf16> to vector<128x128xbf16>
    %cst_33 = arith.constant dense<0.000000e+00> : vector<32x128xf32>
    %33 = tpu.matmul %25, %32, %cst_33 {dimension_numbers = #tpu.dot_dimension_numbers<[1], [0], [0], [1], [0, 0, 1, 1], [], []>} : vector<32x128xbf16>, vector<128x128xbf16>, vector<32x128xf32> -> vector<32x128xf32>
    %c0_34 = arith.constant 0 : index
    %c0_35 = arith.constant 0 : index
    %c0_36 = arith.constant 0 : index
    %34 = vector.load %arg8[%c0_34, %c0_35, %c0_36] : memref<2x18x128xbf16, #tpu.memory_space<vmem>>, vector<2x16x128xbf16>
    %35 = vector.shape_cast %34 : vector<2x16x128xbf16> to vector<32x128xbf16>
    %c0_37 = arith.constant 0 : index
    %c0_38 = arith.constant 0 : index
    %c0_39 = arith.constant 0 : index
    %36 = vector.load %arg4[%c0_37, %c0_38, %c0_39] : memref<3x128x128xbf16, #tpu.memory_space<vmem>>, vector<1x128x128xbf16>
    %37 = vector.shape_cast %36 : vector<1x128x128xbf16> to vector<128x128xbf16>
    %cst_40 = arith.constant dense<0.000000e+00> : vector<32x128xf32>
    %38 = tpu.matmul %35, %37, %cst_40 {dimension_numbers = #tpu.dot_dimension_numbers<[1], [0], [0], [1], [0, 0, 1, 1], [], []>} : vector<32x128xbf16>, vector<128x128xbf16>, vector<32x128xf32> -> vector<32x128xf32>
    %39 = arith.addf %33, %38 : vector<32x128xf32>
    %c0_41 = arith.constant 0 : index
    %c2_42 = arith.constant 2 : index
    %c0_43 = arith.constant 0 : index
    %40 = vector.load %arg8[%c0_41, %c2_42, %c0_43] : memref<2x18x128xbf16, #tpu.memory_space<vmem>>, vector<2x16x128xbf16>
    %41 = vector.shape_cast %40 : vector<2x16x128xbf16> to vector<32x128xbf16>
    %c2_44 = arith.constant 2 : index
    %c0_45 = arith.constant 0 : index
    %c0_46 = arith.constant 0 : index
    %42 = vector.load %arg4[%c2_44, %c0_45, %c0_46] : memref<3x128x128xbf16, #tpu.memory_space<vmem>>, vector<1x128x128xbf16>
    %43 = vector.shape_cast %42 : vector<1x128x128xbf16> to vector<128x128xbf16>
    %cst_47 = arith.constant dense<0.000000e+00> : vector<32x128xf32>
    %44 = tpu.matmul %41, %43, %cst_47 {dimension_numbers = #tpu.dot_dimension_numbers<[1], [0], [0], [1], [0, 0, 1, 1], [], []>} : vector<32x128xbf16>, vector<128x128xbf16>, vector<32x128xf32> -> vector<32x128xf32>
    %45 = arith.addf %39, %44 : vector<32x128xf32>
    %c0_48 = arith.constant 0 : index
    %c0_49 = arith.constant 0 : index
    %46 = vector.load %arg6[%c0_48, %c0_49] : memref<64x128xbf16, #tpu.memory_space<vmem>>, vector<64x128xbf16>
    %cst_50 = arith.constant dense<0.000000e+00> : vector<32x128xf32>
    %47 = tpu.matmul %3, %46, %cst_50 {dimension_numbers = #tpu.dot_dimension_numbers<[1], [0], [0], [1], [0, 0, 1, 1], [], []>} : vector<32x64xbf16>, vector<64x128xbf16>, vector<32x128xf32> -> vector<32x128xf32>
    %48 = arith.addf %45, %47 : vector<32x128xf32>
    %c0_51 = arith.constant 0 : index
    %c0_52 = arith.constant 0 : index
    %49 = vector.load %arg5[%c0_51, %c0_52] : memref<1x128xf32, #tpu.memory_space<vmem>>, vector<1x128xf32>
    %50 = vector.broadcast %49 : vector<1x128xf32> to vector<32x128xf32>
    %51 = arith.addf %48, %50 : vector<32x128xf32>
    %cst_53 = arith.constant 0.000000e+00 : f32
    %52 = vector.broadcast %cst_53 : f32 to vector<32x128xf32>
    %53 = arith.maximumf %51, %52 : vector<32x128xf32>
    %54 = vector.shape_cast %53 : vector<32x128xf32> to vector<2x16x128xf32>
    %c0_54 = arith.constant 0 : index
    %c0_55 = arith.constant 0 : index
    %c0_56 = arith.constant 0 : index
    %55 = vector.load %arg7[%c0_54, %c0_55, %c0_56] : memref<2x16x128xf32, #tpu.memory_space<vmem>>, vector<2x16x128xf32>
    tpu.vector_store %arg7[%c0_54, %c0_55, %c0_56], %54 {strides = array<i32>} : memref<2x16x128xf32, #tpu.memory_space<vmem>>, vector<2x16x128xf32>,
    return
  }
  func.func @transform_0(%arg0: i32) -> (i32, i32, i32) {
    %c0_i32 = arith.constant 0 : i32
    %c0_i32_0 = arith.constant 0 : i32
    %c0_i32_1 = arith.constant 0 : i32
    return %arg0, %c0_i32, %c0_i32_0 : i32, i32, i32
  }
  func.func @transform_1(%arg0: i32) -> (i32, i32, i32) {
    %c0_i32 = arith.constant 0 : i32
    %c0_i32_0 = arith.constant 0 : i32
    %c0_i32_1 = arith.constant 0 : i32
    %c0_i32_2 = arith.constant 0 : i32
    return %c0_i32, %c0_i32_0, %c0_i32_1 : i32, i32, i32
  }
  func.func @transform_2(%arg0: i32) -> (i32, i32) {
    %c0_i32 = arith.constant 0 : i32
    %c0_i32_0 = arith.constant 0 : i32
    %c0_i32_1 = arith.constant 0 : i32
    return %c0_i32, %c0_i32_0 : i32, i32
  }
  func.func @transform_3(%arg0: i32) -> (i32, i32, i32) {
    %c0_i32 = arith.constant 0 : i32
    %c0_i32_0 = arith.constant 0 : i32
    %c0_i32_1 = arith.constant 0 : i32
    %c0_i32_2 = arith.constant 0 : i32
    return %c0_i32, %c0_i32_0, %c0_i32_1 : i32, i32, i32
  }
  func.func @transform_4(%arg0: i32) -> (i32, i32) {
    %c0_i32 = arith.constant 0 : i32
    %c0_i32_0 = arith.constant 0 : i32
    %c0_i32_1 = arith.constant 0 : i32
    return %c0_i32, %c0_i32_0 : i32, i32
  }
  func.func @transform_5(%arg0: i32) -> (i32, i32) {
    %c0_i32 = arith.constant 0 : i32
    %c0_i32_0 = arith.constant 0 : i32
    %c0_i32_1 = arith.constant 0 : i32
    return %c0_i32, %c0_i32_0 : i32, i32
  }
  func.func @transform_6(%arg0: i32) -> (i32, i32, i32) {
    %c0_i32 = arith.constant 0 : i32
    %c0_i32_0 = arith.constant 0 : i32
    %c0_i32_1 = arith.constant 0 : i32
    return %arg0, %c0_i32, %c0_i32_0 : i32, i32, i32
  }
}

</mosaic_0001>

<llo_original>
// kernel: tpu_custom_call.1
$region0: #{tpu_custom_call.1}
  #allocation0 [shape = 'u32[]', space=smem, size = 0x4, offset = 0x4, fixed_abs, tag = 'smem constant byte address 0x4 - core index']
  #allocation1 [shape = 'u32[144,128]{1,0:T(1,128)}', space=vmem, size = 0x12000, scoped, tag = 'internal scratch']
  #allocation2 [shape = 'bf16[2,18,128]{2,1,0:T(8,128)(2,1)}', space=vmem, size = 0x3000, scoped, tag = 'scratch operand']
  %s0 = inlined_call_operand.vmem [shape: bf16[2,18,64], index: 0, kind: input, shape index: {}]
  %s1 = inlined_call_operand.hbm [shape: bf16[3,64,128], index: 1, kind: input, shape index: {}]
  %s2 = inlined_call_operand.vmem [shape: f32[1,128], index: 2, kind: input, shape index: {}]
  %s3 = inlined_call_operand.hbm [shape: bf16[3,128,128], index: 3, kind: input, shape index: {}]
  %s4 = inlined_call_operand.vmem [shape: f32[1,128], index: 4, kind: input, shape index: {}]
  %s5 = inlined_call_operand.vmem [shape: bf16[64,128], index: 5, kind: input, shape index: {}]
  %s6 = inlined_call_operand.hbm [shape: f32[2,16,128], index: 6, kind: output, shape index: {}]
  %s7 = sld [smem:[#allocation0]]
  $region42: #{tpu_custom_call.1} parent=0
    _
  %s9 = ssub.s32 1, %s7
  %s10 = scalar_select 0, %s9, %s7
  $region1: #{tpu_custom_call.1} parent=0
    #allocation3 [shape = 'u8[49152]{0}', space=vmem, size = 0xc000, scoped, tag = 'input window, operand 1, single buffered']
    #allocation4 [shape = 's32[1]{0}', space=sflag, size = 0x4, scoped, tag = 'scoped memory for tpu_custom_call.1']
    #allocation5 [shape = 's32[1]{0}', space=sflag, size = 0x4, scoped, tag = 'scoped memory for tpu_custom_call.1']
    #allocation6 [shape = 'u8[98304]{0}', space=vmem, size = 0x18000, scoped, tag = 'input window, operand 3, single buffered']
    #allocation7 [shape = 's32[1]{0}', space=sflag, size = 0x4, scoped, tag = 'scoped memory for tpu_custom_call.1']
    #allocation8 [shape = 'u8[16384]{0}', space=vmem, size = 0x4000, scoped, tag = 'output window, operand 0, single buffered']
    %11 = vsyncpa [#allocation4], 0
    %12 = vsyncpa [#allocation7], 0
    %13 = vsyncpa [#allocation5], 0
    // Predicated region
    $region2: #{tpu_custom_call.1} parent=1 // pred_check
      _
    $region3: #{tpu_custom_call.1} parent=1 // pred_check_branch
      %15 = sbr.rel (0) target = $region5
    $region4: #{tpu_custom_call.1} parent=1 // pred_region
      _
    $region5: #{tpu_custom_call.1} parent=1 // pred_fallthru
      _
    // Predicated region
    $region6: #{tpu_custom_call.1} parent=1 // pred_check
      _
    $region7: #{tpu_custom_call.1} parent=1 // pred_check_branch
      %17 = sbr.rel (0) target = $region9
    $region8: #{tpu_custom_call.1} parent=1 // pred_region
      %s19 = ssub.s32 1536, 1536
      %20 = vsyncadd [#allocation4], %s19
      %s21 = sshll.u32 [#allocation3], 4
      %s22 = int_to_ptr.vmem [resolvable:$true] %s21
      %27 = dma.hbm_to_vmem [thread:$0]  %s1, 1536, %s22, [#allocation4], 64, 64, 4
    $region9: #{tpu_custom_call.1} parent=1 // pred_fallthru
      _
    // Predicated region
    $region10: #{tpu_custom_call.1} parent=1 // pred_check
      _
    $region11: #{tpu_custom_call.1} parent=1 // pred_check_branch
      %29 = sbr.rel (0) target = $region13
    $region12: #{tpu_custom_call.1} parent=1 // pred_region
      _
    $region13: #{tpu_custom_call.1} parent=1 // pred_fallthru
      _
    // Predicated region
    $region14: #{tpu_custom_call.1} parent=1 // pred_check
      _
    $region15: #{tpu_custom_call.1} parent=1 // pred_check_branch
      %31 = sbr.rel (0) target = $region17
    $region16: #{tpu_custom_call.1} parent=1 // pred_region
      %s33 = ssub.s32 3072, 3072
      %34 = vsyncadd [#allocation7], %s33
      %s35 = sshll.u32 [#allocation6], 4
      %s36 = int_to_ptr.vmem [resolvable:$true] %s35
      %41 = dma.hbm_to_vmem [thread:$0]  %s3, 3072, %s36, [#allocation7], 64, 64, 4
    $region17: #{tpu_custom_call.1} parent=1 // pred_fallthru
      _
    // Predicated region
    $region18: #{tpu_custom_call.1} parent=1 // pred_check
      _
    $region19: #{tpu_custom_call.1} parent=1 // pred_check_branch
      %43 = sbr.rel (0) target = $region21
    $region20: #{tpu_custom_call.1} parent=1 // pred_region
      _
    $region21: #{tpu_custom_call.1} parent=1 // pred_fallthru
      _
    // Predicated region
    $region22: #{tpu_custom_call.1} parent=1 // pred_check
      _
    $region23: #{tpu_custom_call.1} parent=1 // pred_check_branch
      %45 = sbr.rel (0) target = $region25
    $region24: #{tpu_custom_call.1} parent=1 // pred_region
      _
    $region25: #{tpu_custom_call.1} parent=1 // pred_fallthru
      _
    // Predicated region
    $region26: #{tpu_custom_call.1} parent=1 // pred_check
      _
    $region27: #{tpu_custom_call.1} parent=1 // pred_check_branch
      %47 = sbr.rel (0) target = $region29
    $region28: #{tpu_custom_call.1} parent=1 // pred_region
      %48 = dma.done [#allocation4], 1536
    $region29: #{tpu_custom_call.1} parent=1 // pred_fallthru
      _
    // Predicated region
    $region30: #{tpu_custom_call.1} parent=1 // pred_check
      _
    $region31: #{tpu_custom_call.1} parent=1 // pred_check_branch
      %50 = sbr.rel (0) target = $region33
    $region32: #{tpu_custom_call.1} parent=1 // pred_region
      %51 = dma.done [#allocation7], 3072
    $region33: #{tpu_custom_call.1} parent=1 // pred_fallthru
      _
    %v53 = vld [vmem:[%s0] sm:$0xf]
    %v54 = vld [vmem:[%s0 + $0x4] sm:$0xf]
    %v55 = vld [vmem:[%s0 + $0xc] sm:$0xf]
    %v56 = vld [vmem:[%s0 + $0x10] sm:$0xf]
    %v57 = vld [vmem:[%s0 + $0x8] sm:$0x1]
    %v58 = vld [vmem:[%s0 + $0x14] sm:$0x1]
    %vm59 = vsmask.f32 3328
    %vm60 = vsmask.f32 7440
    %vm61 = vmor %vm59, %vm60
    %v63 = vshrl.u32 %v53, 16
    %v65 = vrot.slane %v63, 4
    %v66 = vshll.u32 %v53, 16
    %v68 = vrot.slane %v66, 5
    %v69 = vor.u32 %v65, %v68
    %v70 = vrot.slane %v69, 4
    %v72 = vshll.u32 %v54, 16
    %v74 = vrot.slane %v72, 5
    %v75 = vsel %vm61, %v70, %v74
    %v76 = vshrl.u32 %v54, 16
    %v78 = vrot.slane %v76, 4
    %v79 = vor.u32 %v78, %v74
    %v80 = vrot.slane %v79, 4
    %v82 = vshll.u32 %v57, 16
    %v84 = vrot.slane %v82, 5
    %v85 = vsel %vm61, %v80, %v84
    %v87 = vshrl.u32 %v55, 16
    %v89 = vrot.slane %v87, 4
    %v90 = vshll.u32 %v55, 16
    %v92 = vrot.slane %v90, 5
    %v93 = vor.u32 %v89, %v92
    %v94 = vrot.slane %v93, 4
    %v96 = vshll.u32 %v56, 16
    %v98 = vrot.slane %v96, 5
    %v99 = vsel %vm61, %v94, %v98
    %v100 = vshrl.u32 %v56, 16
    %v102 = vrot.slane %v100, 4
    %v103 = vor.u32 %v102, %v98
    %v104 = vrot.slane %v103, 4
    %v106 = vshll.u32 %v58, 16
    %v108 = vrot.slane %v106, 5
    %v109 = vsel %vm61, %v104, %v108
    %v110 = vld [vmem:[%s0] sm:$0xe]
    %v111 = vld [vmem:[%s0 + $0xc] sm:$0xe]
    %vm118 = vcmask 1042432
    %vm119 = vcmask 1046532
    %vm120 = vmor %vm118, %vm119
    %v121 = vrot.slane %v110, 5
    %v122 = vrot.slane %v121, 4
    %v123 = vrot.slane %v54, 5
    %v124 = vsel %vm120, %v122, %v123
    %v125 = vrot.slane %v123, 4
    %v126 = vrot.slane %v57, 5
    %v127 = vsel %vm120, %v125, %v126
    %v128 = vrot.slane %v111, 5
    %v129 = vrot.slane %v128, 4
    %v130 = vrot.slane %v56, 5
    %v131 = vsel %vm120, %v129, %v130
    %v132 = vrot.slane %v130, 4
    %v133 = vrot.slane %v58, 5
    %v134 = vsel %vm120, %v132, %v133
    %v135 = vld [vmem:[#allocation3] sm:$0xf]
    %v136 = vld [vmem:[#allocation3 + $0x4] sm:$0xf]
    %v137 = vld [vmem:[#allocation3 + $0x8] sm:$0xf]
    %v138 = vld [vmem:[#allocation3 + $0xc] sm:$0xf]
    %v139 = vld [vmem:[#allocation3 + $0x10] sm:$0xf]
    %v140 = vld [vmem:[#allocation3 + $0x14] sm:$0xf]
    %v141 = vld [vmem:[#allocation3 + $0x18] sm:$0xf]
    %v142 = vld [vmem:[#allocation3 + $0x1c] sm:$0xf]
    %s143 = scalar_lea.vmem [#allocation3], 32
    %v144 = vld [vmem:[%s143] sm:$0xf]
    %v145 = vld [vmem:[%s143 + $0x4] sm:$0xf]
    %v146 = vld [vmem:[%s143 + $0x8] sm:$0xf]
    %v147 = vld [vmem:[%s143 + $0xc] sm:$0xf]
    %v148 = vld [vmem:[%s143 + $0x10] sm:$0xf]
    %v149 = vld [vmem:[%s143 + $0x14] sm:$0xf]
    %v150 = vld [vmem:[%s143 + $0x18] sm:$0xf]
    %v151 = vld [vmem:[%s143 + $0x1c] sm:$0xf]
    %v152 = vunpack.c.l.b16 %v75
    %v153 = vunpack.c.l.b16 %v85
    %v154 = vunpack.c.l.b16 %v99
    %v155 = vunpack.c.l.b16 %v109
    %v156 = vpack.c.b16 %v153, %v152
    %v157 = vpack.c.b16 %v155, %v154
    %v166 = vunpack.c.l.b16 %v144
    %v167 = vunpack.c.l.b16 %v145
    %v168 = vunpack.c.l.b16 %v146
    %v169 = vunpack.c.l.b16 %v147
    %v170 = vunpack.c.l.b16 %v148
    %v171 = vunpack.c.l.b16 %v149
    %v172 = vunpack.c.l.b16 %v150
    %v173 = vunpack.c.l.b16 %v151
    %v174 = vpack.c.b16 %v167, %v166
    %v175 = vpack.c.b16 %v169, %v168
    %v176 = vpack.c.b16 %v171, %v170
    %v177 = vpack.c.b16 %v173, %v172
    %vm182 = vcmask 523264
    %v184 = vsel %vm182, %v156, 0
    %v187 = vsel %vm182, %v157, 0
    %189 = vmatprep.subr.bf16.mxu0 0
    %190 = vmatpush1.bf16.msra.mxu0 0
    %191 = vmatprep.subr.bf16.mxu0 0
    %192 = vmatpush1.bf16.msra.mxu0 0
    %193 = vmatprep.subr.bf16.mxu0 0
    %194 = vmatpush1.bf16.msra.mxu0 0
    %195 = vmatprep.subr.bf16.mxu0 0
    %196 = vmatpush1.bf16.msra.mxu0 0
    %197 = vmatprep.subr.bf16.mxu0 0
    %198 = vmatpush1.bf16.msra.mxu0 %v177
    %199 = vmatprep.subr.bf16.mxu0 0
    %200 = vmatpush1.bf16.msra.mxu0 %v176
    %201 = vmatprep.subr.bf16.mxu0 0
    %202 = vmatpush1.bf16.msra.mxu0 %v175
    %203 = vmatprep.subr.bf16.mxu0 0
    %204 = vmatpush1.bf16.msra.mxu0 %v174
    %205 = vmatprep.subr.bf16.mxu0 0
    %206 = vmatpush2.bf16.msra.mxu0 0
    %207 = vmatprep.subr.bf16.mxu0 0
    %208 = vmatpush2.bf16.msra.mxu0 0
    %209 = vmatprep.subr.bf16.mxu0 0
    %210 = vmatpush2.bf16.msra.mxu0 0
    %211 = vmatprep.subr.bf16.mxu0 0
    %212 = vmatpush2.bf16.msra.mxu0 0
    %213 = vmatprep.subr.bf16.mxu0 0
    %214 = vmatpush2.bf16.msra.mxu0 0
    %215 = vmatprep.subr.bf16.mxu0 0
    %216 = vmatpush2.bf16.msra.mxu0 0
    %217 = vmatprep.subr.bf16.mxu0 0
    %218 = vmatpush2.bf16.msra.mxu0 0
    %219 = vmatprep.subr.bf16.mxu0 0
    %220 = vmatpush2.bf16.msra.mxu0 0
    %221 = vmatprep.mubr.bf16.mxu0 0
    %222 = vmatmul.mubr.bf16.gmra.mxu0 %v184
    %v223 = vpop.f32.mrf.mxu0
    %v224 = vadd.f32 0.0, %v223
    %v225 = vpop.f32.mrf.mxu0
    %v226 = vpop.f32.mrf.mxu0
    %v227 = vadd.f32 0.0, %v226
    %v228 = vpop.f32.mrf.mxu0
    %229 = vmatprep.mubr.bf16.mxu0 0
    %230 = vmatmul.mubr.bf16.gmra.mxu0 %v187
    %v231 = vpop.f32.mrf.mxu0
    %v232 = vadd.f32 0.0, %v231
    %v233 = vpop.f32.mrf.mxu0
    %v234 = vpop.f32.mrf.mxu0
    %v235 = vadd.f32 0.0, %v234
    %v236 = vpop.f32.mrf.mxu0
    %237 = vdwg.mxu0
    %v240 = vunpack.c.l.b16 %v53
    %v241 = vunpack.c.l.b16 %v54
    %v242 = vunpack.c.l.b16 %v55
    %v243 = vunpack.c.l.b16 %v56
    %v244 = vpack.c.b16 %v241, %v240
    %v245 = vpack.c.b16 %v243, %v242
    %v254 = vunpack.c.l.b16 %v135
    %v255 = vunpack.c.l.b16 %v136
    %v256 = vunpack.c.l.b16 %v137
    %v257 = vunpack.c.l.b16 %v138
    %v258 = vunpack.c.l.b16 %v139
    %v259 = vunpack.c.l.b16 %v140
    %v260 = vunpack.c.l.b16 %v141
    %v261 = vunpack.c.l.b16 %v142
    %v262 = vpack.c.b16 %v255, %v254
    %v263 = vpack.c.b16 %v257, %v256
    %v264 = vpack.c.b16 %v259, %v258
    %v265 = vpack.c.b16 %v261, %v260
    %v271 = vsel %vm182, %v244, 0
    %v274 = vsel %vm182, %v245, 0
    %276 = vmatprep.subr.bf16.mxu0 0
    %277 = vmatpush1.bf16.msra.mxu0 0
    %278 = vmatprep.subr.bf16.mxu0 0
    %279 = vmatpush1.bf16.msra.mxu0 0
    %280 = vmatprep.subr.bf16.mxu0 0
    %281 = vmatpush1.bf16.msra.mxu0 0
    %282 = vmatprep.subr.bf16.mxu0 0
    %283 = vmatpush1.bf16.msra.mxu0 0
    %284 = vmatprep.subr.bf16.mxu0 0
    %285 = vmatpush1.bf16.msra.mxu0 %v265
    %286 = vmatprep.subr.bf16.mxu0 0
    %287 = vmatpush1.bf16.msra.mxu0 %v264
    %288 = vmatprep.subr.bf16.mxu0 0
    %289 = vmatpush1.bf16.msra.mxu0 %v263
    %290 = vmatprep.subr.bf16.mxu0 0
    %291 = vmatpush1.bf16.msra.mxu0 %v262
    %292 = vmatprep.subr.bf16.mxu0 0
    %293 = vmatpush2.bf16.msra.mxu0 0
    %294 = vmatprep.subr.bf16.mxu0 0
    %295 = vmatpush2.bf16.msra.mxu0 0
    %296 = vmatprep.subr.bf16.mxu0 0
    %297 = vmatpush2.bf16.msra.mxu0 0
    %298 = vmatprep.subr.bf16.mxu0 0
    %299 = vmatpush2.bf16.msra.mxu0 0
    %300 = vmatprep.subr.bf16.mxu0 0
    %301 = vmatpush2.bf16.msra.mxu0 0
    %302 = vmatprep.subr.bf16.mxu0 0
    %303 = vmatpush2.bf16.msra.mxu0 0
    %304 = vmatprep.subr.bf16.mxu0 0
    %305 = vmatpush2.bf16.msra.mxu0 0
    %306 = vmatprep.subr.bf16.mxu0 0
    %307 = vmatpush2.bf16.msra.mxu0 0
    %308 = vmatprep.mubr.bf16.mxu0 0
    %309 = vmatmul.mubr.bf16.gmra.mxu0 %v271
    %v310 = vpop.f32.mrf.mxu0
    %v311 = vadd.f32 %v224, %v310
    %v312 = vpop.f32.mrf.mxu0
    %v313 = vpop.f32.mrf.mxu0
    %v314 = vadd.f32 %v227, %v313
    %v315 = vpop.f32.mrf.mxu0
    %316 = vmatprep.mubr.bf16.mxu0 0
    %317 = vmatmul.mubr.bf16.gmra.mxu0 %v274
    %v318 = vpop.f32.mrf.mxu0
    %v319 = vadd.f32 %v232, %v318
    %v320 = vpop.f32.mrf.mxu0
    %v321 = vpop.f32.mrf.mxu0
    %v322 = vadd.f32 %v235, %v321
    %v323 = vpop.f32.mrf.mxu0
    %324 = vdwg.mxu0
    %s325 = scalar_lea.vmem [#allocation3], 64
    %v326 = vld [vmem:[%s325] sm:$0xf]
    %v327 = vld [vmem:[%s325 + $0x4] sm:$0xf]
    %v328 = vld [vmem:[%s325 + $0x8] sm:$0xf]
    %v329 = vld [vmem:[%s325 + $0xc] sm:$0xf]
    %v330 = vld [vmem:[%s325 + $0x10] sm:$0xf]
    %v331 = vld [vmem:[%s325 + $0x14] sm:$0xf]
    %v332 = vld [vmem:[%s325 + $0x18] sm:$0xf]
    %v333 = vld [vmem:[%s325 + $0x1c] sm:$0xf]
    %v334 = vunpack.c.l.b16 %v124
    %v335 = vunpack.c.l.b16 %v127
    %v336 = vunpack.c.l.b16 %v131
    %v337 = vunpack.c.l.b16 %v134
    %v338 = vpack.c.b16 %v335, %v334
    %v339 = vpack.c.b16 %v337, %v336
    %v348 = vunpack.c.l.b16 %v326
    %v349 = vunpack.c.l.b16 %v327
    %v350 = vunpack.c.l.b16 %v328
    %v351 = vunpack.c.l.b16 %v329
    %v352 = vunpack.c.l.b16 %v330
    %v353 = vunpack.c.l.b16 %v331
    %v354 = vunpack.c.l.b16 %v332
    %v355 = vunpack.c.l.b16 %v333
    %v356 = vpack.c.b16 %v349, %v348
    %v357 = vpack.c.b16 %v351, %v350
    %v358 = vpack.c.b16 %v353, %v352
    %v359 = vpack.c.b16 %v355, %v354
    %v365 = vsel %vm182, %v338, 0
    %v368 = vsel %vm182, %v339, 0
    %370 = vmatprep.subr.bf16.mxu0 0
    %371 = vmatpush1.bf16.msra.mxu0 0
    %372 = vmatprep.subr.bf16.mxu0 0
    %373 = vmatpush1.bf16.msra.mxu0 0
    %374 = vmatprep.subr.bf16.mxu0 0
    %375 = vmatpush1.bf16.msra.mxu0 0
    %376 = vmatprep.subr.bf16.mxu0 0
    %377 = vmatpush1.bf16.msra.mxu0 0
    %378 = vmatprep.subr.bf16.mxu0 0
    %379 = vmatpush1.bf16.msra.mxu0 %v359
    %380 = vmatprep.subr.bf16.mxu0 0
    %381 = vmatpush1.bf16.msra.mxu0 %v358
    %382 = vmatprep.subr.bf16.mxu0 0
    %383 = vmatpush1.bf16.msra.mxu0 %v357
    %384 = vmatprep.subr.bf16.mxu0 0
    %385 = vmatpush1.bf16.msra.mxu0 %v356
    %386 = vmatprep.subr.bf16.mxu0 0
    %387 = vmatpush2.bf16.msra.mxu0 0
    %388 = vmatprep.subr.bf16.mxu0 0
    %389 = vmatpush2.bf16.msra.mxu0 0
    %390 = vmatprep.subr.bf16.mxu0 0
    %391 = vmatpush2.bf16.msra.mxu0 0
    %392 = vmatprep.subr.bf16.mxu0 0
    %393 = vmatpush2.bf16.msra.mxu0 0
    %394 = vmatprep.subr.bf16.mxu0 0
    %395 = vmatpush2.bf16.msra.mxu0 0
    %396 = vmatprep.subr.bf16.mxu0 0
    %397 = vmatpush2.bf16.msra.mxu0 0
    %398 = vmatprep.subr.bf16.mxu0 0
    %399 = vmatpush2.bf16.msra.mxu0 0
    %400 = vmatprep.subr.bf16.mxu0 0
    %401 = vmatpush2.bf16.msra.mxu0 0
    %402 = vmatprep.mubr.bf16.mxu0 0
    %403 = vmatmul.mubr.bf16.gmra.mxu0 %v365
    %v404 = vpop.f32.mrf.mxu0
    %v405 = vadd.f32 0.0, %v404
    %v406 = vpop.f32.mrf.mxu0
    %v407 = vpop.f32.mrf.mxu0
    %v408 = vadd.f32 0.0, %v407
    %v409 = vpop.f32.mrf.mxu0
    %410 = vmatprep.mubr.bf16.mxu0 0
    %411 = vmatmul.mubr.bf16.gmra.mxu0 %v368
    %v412 = vpop.f32.mrf.mxu0
    %v413 = vadd.f32 0.0, %v412
    %v414 = vpop.f32.mrf.mxu0
    %v415 = vpop.f32.mrf.mxu0
    %v416 = vadd.f32 0.0, %v415
    %v417 = vpop.f32.mrf.mxu0
    %418 = vdwg.mxu0
    %v419 = vadd.f32 %v311, %v405
    %v420 = vadd.f32 %v314, %v408
    %v421 = vadd.f32 %v319, %v413
    %v422 = vadd.f32 %v322, %v416
    %v423 = vld [vmem:[%s2] sm:$0x1]
    %v425 = vlaneseq
    %v426 = vshrl.u32 %v425, 7
    %v427 = vsub.s32 0, %v426
    %v428 = vrot.slane %v423, %v427
    %v430 = vadd.f32 %v419, %v428
    %v431 = vadd.f32 %v420, %v428
    %v432 = vadd.f32 %v421, %v428
    %v433 = vadd.f32 %v422, %v428
    %vm434 = vcmp.gt.f32.partialorder %v430, 0.0
    %vm435 = vcmp.gt.f32.partialorder %v431, 0.0
    %vm436 = vcmp.gt.f32.partialorder %v432, 0.0
    %vm437 = vcmp.gt.f32.partialorder %v433, 0.0
    %v438 = vmul.f32 %v430, 0.01
    %v439 = vmul.f32 %v431, 0.01
    %v440 = vmul.f32 %v432, 0.01
    %v441 = vmul.f32 %v433, 0.01
    %v442 = vsel %vm434, %v430, %v438
    %v443 = vsel %vm435, %v431, %v439
    %v444 = vsel %vm436, %v432, %v440
    %v445 = vsel %vm437, %v433, %v441
    %v446 = vpack.c.bf16 %v443, %v442
    %v447 = vpack.c.bf16 %v445, %v444
    %vm448 = vcmask 1040384
    %vm449 = vsmask.f32 256
    %vm450 = vmand %vm448, %vm449
    %v451 = vld [vmem:[#allocation2] sm:$0x1]
    %v452 = vsel %vm450, 0, %v451
    %453 = vst [vmem:[#allocation2] sm:$0x1] %v452
    %v454 = vld [vmem:[#allocation2 + $0xc] sm:$0x1]
    %v455 = vsel %vm450, 0, %v454
    %456 = vst [vmem:[#allocation2 + $0xc] sm:$0x1] %v455
    %vm457 = vsmask.f32 7938
    %vm458 = vmand %vm448, %vm457
    %v459 = vld [vmem:[#allocation2 + $0x8] sm:$0x1]
    %v460 = vsel %vm458, 0, %v459
    %461 = vst [vmem:[#allocation2 + $0x8] sm:$0x1] %v460
    %v462 = vld [vmem:[#allocation2 + $0x14] sm:$0x1]
    %v463 = vsel %vm458, 0, %v462
    %464 = vst [vmem:[#allocation2 + $0x14] sm:$0x1] %v463
    %v467 = vunpack.c.l.b16 %v446
    %v468 = vunpack.c.h.b16 %v446
    %v469 = vunpack.c.l.b16 %v447
    %v470 = vunpack.c.h.b16 %v447
    %v471 = vpack.c.b16 %v467, %v467
    %v472 = vpack.c.b16 %v468, %v468
    %v473 = vpack.c.b16 %v469, %v469
    %v474 = vpack.c.b16 %v470, %v470
    %vm475 = vsmask.f32 4368
    %vm476 = vmor %vm449, %vm475
    %v478 = vshrl.u32 %v471, 16
    %v480 = vrot.slane %v478, 7
    %v481 = vshll.u32 %v471, 16
    %v483 = vor.u32 %v480, %v481
    %v484 = vrot.slane %v480, 4
    %v486 = vshrl.u32 %v472, 16
    %v488 = vrot.slane %v486, 7
    %v489 = vshll.u32 %v472, 16
    %v491 = vor.u32 %v488, %v489
    %v492 = vsel %vm476, %v484, %v491
    %v493 = vrot.slane %v488, 4
    %v495 = vshrl.u32 %v473, 16
    %v497 = vrot.slane %v495, 7
    %v498 = vshll.u32 %v473, 16
    %v500 = vor.u32 %v497, %v498
    %v501 = vrot.slane %v497, 4
    %v503 = vshrl.u32 %v474, 16
    %v505 = vrot.slane %v503, 7
    %v506 = vshll.u32 %v474, 16
    %v508 = vor.u32 %v505, %v506
    %v509 = vsel %vm476, %v501, %v508
    %v510 = vrot.slane %v505, 4
    %vm517 = vcmask 1043456
    %vm518 = vmand %vm517, %vm457
    %v519 = vld [vmem:[#allocation2] sm:$0xf]
    %v520 = vsel %vm518, %v483, %v519
    %521 = vst [vmem:[#allocation2] sm:$0xf] %v520
    %522 = vst [vmem:[#allocation2 + $0x4] sm:$0xf] %v492
    %v523 = vld [vmem:[#allocation2 + $0x8] sm:$0x1]
    %v524 = vsel %vm450, %v493, %v523
    %525 = vst [vmem:[#allocation2 + $0x8] sm:$0x1] %v524
    %v526 = vld [vmem:[#allocation2 + $0xc] sm:$0xf]
    %v527 = vsel %vm518, %v500, %v526
    %528 = vst [vmem:[#allocation2 + $0xc] sm:$0xf] %v527
    %529 = vst [vmem:[#allocation2 + $0x10] sm:$0xf] %v509
    %v530 = vld [vmem:[#allocation2 + $0x14] sm:$0x1]
    %v531 = vsel %vm450, %v510, %v530
    %532 = vst [vmem:[#allocation2 + $0x14] sm:$0x1] %v531
    %s533 = scalar_lea.vmem [#allocation6], 64
    %v534 = vld [vmem:[%s533] sm:$0xf]
    %v535 = vld [vmem:[%s533 + $0x4] sm:$0xf]
    %v536 = vld [vmem:[%s533 + $0x8] sm:$0xf]
    %v537 = vld [vmem:[%s533 + $0xc] sm:$0xf]
    %v538 = vld [vmem:[%s533 + $0x10] sm:$0xf]
    %v539 = vld [vmem:[%s533 + $0x14] sm:$0xf]
    %v540 = vld [vmem:[%s533 + $0x18] sm:$0xf]
    %v541 = vld [vmem:[%s533 + $0x1c] sm:$0xf]
    %v542 = vld [vmem:[%s533 + $0x20] sm:$0xf]
    %v543 = vld [vmem:[%s533 + $0x24] sm:$0xf]
    %v544 = vld [vmem:[%s533 + $0x28] sm:$0xf]
    %v545 = vld [vmem:[%s533 + $0x2c] sm:$0xf]
    %v546 = vld [vmem:[%s533 + $0x30] sm:$0xf]
    %v547 = vld [vmem:[%s533 + $0x34] sm:$0xf]
    %v548 = vld [vmem:[%s533 + $0x38] sm:$0xf]
    %v549 = vld [vmem:[%s533 + $0x3c] sm:$0xf]
    %v550 = vld [vmem:[#allocation2] sm:$0xf]
    %v551 = vld [vmem:[#allocation2 + $0x4] sm:$0xf]
    %v552 = vld [vmem:[#allocation2 + $0xc] sm:$0xf]
    %v553 = vld [vmem:[#allocation2 + $0x10] sm:$0xf]
    %v554 = vld [vmem:[#allocation6] sm:$0xf]
    %v555 = vld [vmem:[#allocation6 + $0x4] sm:$0xf]
    %v556 = vld [vmem:[#allocation6 + $0x8] sm:$0xf]
    %v557 = vld [vmem:[#allocation6 + $0xc] sm:$0xf]
    %v558 = vld [vmem:[#allocation6 + $0x10] sm:$0xf]
    %v559 = vld [vmem:[#allocation6 + $0x14] sm:$0xf]
    %v560 = vld [vmem:[#allocation6 + $0x18] sm:$0xf]
    %v561 = vld [vmem:[#allocation6 + $0x1c] sm:$0xf]
    %v562 = vld [vmem:[#allocation6 + $0x20] sm:$0xf]
    %v563 = vld [vmem:[#allocation6 + $0x24] sm:$0xf]
    %v564 = vld [vmem:[#allocation6 + $0x28] sm:$0xf]
    %v565 = vld [vmem:[#allocation6 + $0x2c] sm:$0xf]
    %v566 = vld [vmem:[#allocation6 + $0x30] sm:$0xf]
    %v567 = vld [vmem:[#allocation6 + $0x34] sm:$0xf]
    %v568 = vld [vmem:[#allocation6 + $0x38] sm:$0xf]
    %v569 = vld [vmem:[#allocation6 + $0x3c] sm:$0xf]
    %v574 = vunpack.c.l.b16 %v550
    %v575 = vunpack.c.l.b16 %v551
    %v576 = vunpack.c.l.b16 %v552
    %v577 = vunpack.c.l.b16 %v553
    %v578 = vpack.c.b16 %v575, %v574
    %v579 = vpack.c.b16 %v577, %v576
    %v598 = vunpack.c.l.b16 %v554
    %v599 = vunpack.c.l.b16 %v555
    %v600 = vunpack.c.l.b16 %v556
    %v601 = vunpack.c.l.b16 %v557
    %v602 = vunpack.c.l.b16 %v558
    %v603 = vunpack.c.l.b16 %v559
    %v604 = vunpack.c.l.b16 %v560
    %v605 = vunpack.c.l.b16 %v561
    %v606 = vunpack.c.l.b16 %v562
    %v607 = vunpack.c.l.b16 %v563
    %v608 = vunpack.c.l.b16 %v564
    %v609 = vunpack.c.l.b16 %v565
    %v610 = vunpack.c.l.b16 %v566
    %v611 = vunpack.c.l.b16 %v567
    %v612 = vunpack.c.l.b16 %v568
    %v613 = vunpack.c.l.b16 %v569
    %v614 = vpack.c.b16 %v599, %v598
    %v615 = vpack.c.b16 %v601, %v600
    %v616 = vpack.c.b16 %v603, %v602
    %v617 = vpack.c.b16 %v605, %v604
    %v618 = vpack.c.b16 %v607, %v606
    %v619 = vpack.c.b16 %v609, %v608
    %v620 = vpack.c.b16 %v611, %v610
    %v621 = vpack.c.b16 %v613, %v612
    %630 = vmatprep.subr.bf16.mxu0 0
    %631 = vmatpush1.bf16.msra.mxu0 %v621
    %632 = vmatprep.subr.bf16.mxu0 0
    %633 = vmatpush1.bf16.msra.mxu0 %v620
    %634 = vmatprep.subr.bf16.mxu0 0
    %635 = vmatpush1.bf16.msra.mxu0 %v619
    %636 = vmatprep.subr.bf16.mxu0 0
    %637 = vmatpush1.bf16.msra.mxu0 %v618
    %638 = vmatprep.subr.bf16.mxu0 0
    %639 = vmatpush1.bf16.msra.mxu0 %v617
    %640 = vmatprep.subr.bf16.mxu0 0
    %641 = vmatpush1.bf16.msra.mxu0 %v616
    %642 = vmatprep.subr.bf16.mxu0 0
    %643 = vmatpush1.bf16.msra.mxu0 %v615
    %644 = vmatprep.subr.bf16.mxu0 0
    %645 = vmatpush1.bf16.msra.mxu0 %v614
    %646 = vmatprep.subr.bf16.mxu0 0
    %647 = vmatpush2.bf16.msra.mxu0 0
    %648 = vmatprep.subr.bf16.mxu0 0
    %649 = vmatpush2.bf16.msra.mxu0 0
    %650 = vmatprep.subr.bf16.mxu0 0
    %651 = vmatpush2.bf16.msra.mxu0 0
    %652 = vmatprep.subr.bf16.mxu0 0
    %653 = vmatpush2.bf16.msra.mxu0 0
    %654 = vmatprep.subr.bf16.mxu0 0
    %655 = vmatpush2.bf16.msra.mxu0 0
    %656 = vmatprep.subr.bf16.mxu0 0
    %657 = vmatpush2.bf16.msra.mxu0 0
    %658 = vmatprep.subr.bf16.mxu0 0
    %659 = vmatpush2.bf16.msra.mxu0 0
    %660 = vmatprep.subr.bf16.mxu0 0
    %661 = vmatpush2.bf16.msra.mxu0 0
    %662 = vmatprep.mubr.bf16.mxu0 0
    %663 = vmatmul.mubr.bf16.gmra.mxu0 %v578
    %v664 = vpop.f32.mrf.mxu0
    %v665 = vadd.f32 0.0, %v664
    %v666 = vpop.f32.mrf.mxu0
    %v667 = vpop.f32.mrf.mxu0
    %v668 = vadd.f32 0.0, %v667
    %v669 = vpop.f32.mrf.mxu0
    %670 = vmatprep.mubr.bf16.mxu0 0
    %671 = vmatmul.mubr.bf16.gmra.mxu0 %v579
    %v672 = vpop.f32.mrf.mxu0
    %v673 = vadd.f32 0.0, %v672
    %v674 = vpop.f32.mrf.mxu0
    %v675 = vpop.f32.mrf.mxu0
    %v676 = vadd.f32 0.0, %v675
    %v677 = vpop.f32.mrf.mxu0
    %678 = vdwg.mxu0
    %v695 = vunpack.c.l.b16 %v534
    %v696 = vunpack.c.l.b16 %v535
    %v697 = vunpack.c.l.b16 %v536
    %v698 = vunpack.c.l.b16 %v537
    %v699 = vunpack.c.l.b16 %v538
    %v700 = vunpack.c.l.b16 %v539
    %v701 = vunpack.c.l.b16 %v540
    %v702 = vunpack.c.l.b16 %v541
    %v703 = vunpack.c.l.b16 %v542
    %v704 = vunpack.c.l.b16 %v543
    %v705 = vunpack.c.l.b16 %v544
    %v706 = vunpack.c.l.b16 %v545
    %v707 = vunpack.c.l.b16 %v546
    %v708 = vunpack.c.l.b16 %v547
    %v709 = vunpack.c.l.b16 %v548
    %v710 = vunpack.c.l.b16 %v549
    %v711 = vpack.c.b16 %v696, %v695
    %v712 = vpack.c.b16 %v698, %v697
    %v713 = vpack.c.b16 %v700, %v699
    %v714 = vpack.c.b16 %v702, %v701
    %v715 = vpack.c.b16 %v704, %v703
    %v716 = vpack.c.b16 %v706, %v705
    %v717 = vpack.c.b16 %v708, %v707
    %v718 = vpack.c.b16 %v710, %v709
    %727 = vmatprep.subr.bf16.mxu0 0
    %728 = vmatpush1.bf16.msra.mxu0 %v718
    %729 = vmatprep.subr.bf16.mxu0 0
    %730 = vmatpush1.bf16.msra.mxu0 %v717
    %731 = vmatprep.subr.bf16.mxu0 0
    %732 = vmatpush1.bf16.msra.mxu0 %v716
    %733 = vmatprep.subr.bf16.mxu0 0
    %734 = vmatpush1.bf16.msra.mxu0 %v715
    %735 = vmatprep.subr.bf16.mxu0 0
    %736 = vmatpush1.bf16.msra.mxu0 %v714
    %737 = vmatprep.subr.bf16.mxu0 0
    %738 = vmatpush1.bf16.msra.mxu0 %v713
    %739 = vmatprep.subr.bf16.mxu0 0
    %740 = vmatpush1.bf16.msra.mxu0 %v712
    %741 = vmatprep.subr.bf16.mxu0 0
    %742 = vmatpush1.bf16.msra.mxu0 %v711
    %743 = vmatprep.subr.bf16.mxu0 0
    %744 = vmatpush2.bf16.msra.mxu0 0
    %745 = vmatprep.subr.bf16.mxu0 0
    %746 = vmatpush2.bf16.msra.mxu0 0
    %747 = vmatprep.subr.bf16.mxu0 0
    %748 = vmatpush2.bf16.msra.mxu0 0
    %749 = vmatprep.subr.bf16.mxu0 0
    %750 = vmatpush2.bf16.msra.mxu0 0
    %751 = vmatprep.subr.bf16.mxu0 0
    %752 = vmatpush2.bf16.msra.mxu0 0
    %753 = vmatprep.subr.bf16.mxu0 0
    %754 = vmatpush2.bf16.msra.mxu0 0
    %755 = vmatprep.subr.bf16.mxu0 0
    %756 = vmatpush2.bf16.msra.mxu0 0
    %757 = vmatprep.subr.bf16.mxu0 0
    %758 = vmatpush2.bf16.msra.mxu0 0
    %759 = vmatprep.mubr.bf16.mxu0 0
    %760 = vmatmul.mubr.bf16.gmra.mxu0 %v446
    %v761 = vpop.f32.mrf.mxu0
    %v762 = vadd.f32 %v665, %v761
    %v763 = vpop.f32.mrf.mxu0
    %v764 = vpop.f32.mrf.mxu0
    %v765 = vadd.f32 %v668, %v764
    %v766 = vpop.f32.mrf.mxu0
    %767 = vmatprep.mubr.bf16.mxu0 0
    %768 = vmatmul.mubr.bf16.gmra.mxu0 %v447
    %v769 = vpop.f32.mrf.mxu0
    %v770 = vadd.f32 %v673, %v769
    %v771 = vpop.f32.mrf.mxu0
    %v772 = vpop.f32.mrf.mxu0
    %v773 = vadd.f32 %v676, %v772
    %v774 = vpop.f32.mrf.mxu0
    %775 = vdwg.mxu0
    %v776 = vld [vmem:[#allocation2] sm:$0xe]
    %v777 = vld [vmem:[#allocation2 + $0x4] sm:$0xf]
    %v778 = vld [vmem:[#allocation2 + $0x8] sm:$0x1]
    %v779 = vld [vmem:[#allocation2 + $0xc] sm:$0xe]
    %v780 = vld [vmem:[#allocation2 + $0x10] sm:$0xf]
    %v781 = vld [vmem:[#allocation2 + $0x14] sm:$0x1]
    %v788 = vrot.slane %v776, 5
    %v789 = vrot.slane %v788, 4
    %v790 = vrot.slane %v777, 5
    %v791 = vsel %vm120, %v789, %v790
    %v792 = vrot.slane %v790, 4
    %v793 = vrot.slane %v778, 5
    %v794 = vsel %vm120, %v792, %v793
    %v795 = vrot.slane %v779, 5
    %v796 = vrot.slane %v795, 4
    %v797 = vrot.slane %v780, 5
    %v798 = vsel %vm120, %v796, %v797
    %v799 = vrot.slane %v797, 4
    %v800 = vrot.slane %v781, 5
    %v801 = vsel %vm120, %v799, %v800
    %s802 = scalar_lea.vmem [#allocation6], 128
    %v803 = vld [vmem:[%s802] sm:$0xf]
    %v804 = vld [vmem:[%s802 + $0x4] sm:$0xf]
    %v805 = vld [vmem:[%s802 + $0x8] sm:$0xf]
    %v806 = vld [vmem:[%s802 + $0xc] sm:$0xf]
    %v807 = vld [vmem:[%s802 + $0x10] sm:$0xf]
    %v808 = vld [vmem:[%s802 + $0x14] sm:$0xf]
    %v809 = vld [vmem:[%s802 + $0x18] sm:$0xf]
    %v810 = vld [vmem:[%s802 + $0x1c] sm:$0xf]
    %v811 = vld [vmem:[%s802 + $0x20] sm:$0xf]
    %v812 = vld [vmem:[%s802 + $0x24] sm:$0xf]
    %v813 = vld [vmem:[%s802 + $0x28] sm:$0xf]
    %v814 = vld [vmem:[%s802 + $0x2c] sm:$0xf]
    %v815 = vld [vmem:[%s802 + $0x30] sm:$0xf]
    %v816 = vld [vmem:[%s802 + $0x34] sm:$0xf]
    %v817 = vld [vmem:[%s802 + $0x38] sm:$0xf]
    %v818 = vld [vmem:[%s802 + $0x3c] sm:$0xf]
    %v819 = vunpack.c.l.b16 %v791
    %v820 = vunpack.c.l.b16 %v794
    %v821 = vunpack.c.l.b16 %v798
    %v822 = vunpack.c.l.b16 %v801
    %v823 = vpack.c.b16 %v820, %v819
    %v824 = vpack.c.b16 %v822, %v821
    %v843 = vunpack.c.l.b16 %v803
    %v844 = vunpack.c.l.b16 %v804
    %v845 = vunpack.c.l.b16 %v805
    %v846 = vunpack.c.l.b16 %v806
    %v847 = vunpack.c.l.b16 %v807
    %v848 = vunpack.c.l.b16 %v808
    %v849 = vunpack.c.l.b16 %v809
    %v850 = vunpack.c.l.b16 %v810
    %v851 = vunpack.c.l.b16 %v811
    %v852 = vunpack.c.l.b16 %v812
    %v853 = vunpack.c.l.b16 %v813
    %v854 = vunpack.c.l.b16 %v814
    %v855 = vunpack.c.l.b16 %v815
    %v856 = vunpack.c.l.b16 %v816
    %v857 = vunpack.c.l.b16 %v817
    %v858 = vunpack.c.l.b16 %v818
    %v859 = vpack.c.b16 %v844, %v843
    %v860 = vpack.c.b16 %v846, %v845
    %v861 = vpack.c.b16 %v848, %v847
    %v862 = vpack.c.b16 %v850, %v849
    %v863 = vpack.c.b16 %v852, %v851
    %v864 = vpack.c.b16 %v854, %v853
    %v865 = vpack.c.b16 %v856, %v855
    %v866 = vpack.c.b16 %v858, %v857
    %875 = vmatprep.subr.bf16.mxu0 0
    %876 = vmatpush1.bf16.msra.mxu0 %v866
    %877 = vmatprep.subr.bf16.mxu0 0
    %878 = vmatpush1.bf16.msra.mxu0 %v865
    %879 = vmatprep.subr.bf16.mxu0 0
    %880 = vmatpush1.bf16.msra.mxu0 %v864
    %881 = vmatprep.subr.bf16.mxu0 0
    %882 = vmatpush1.bf16.msra.mxu0 %v863
    %883 = vmatprep.subr.bf16.mxu0 0
    %884 = vmatpush1.bf16.msra.mxu0 %v862
    %885 = vmatprep.subr.bf16.mxu0 0
    %886 = vmatpush1.bf16.msra.mxu0 %v861
    %887 = vmatprep.subr.bf16.mxu0 0
    %888 = vmatpush1.bf16.msra.mxu0 %v860
    %889 = vmatprep.subr.bf16.mxu0 0
    %890 = vmatpush1.bf16.msra.mxu0 %v859
    %891 = vmatprep.subr.bf16.mxu0 0
    %892 = vmatpush2.bf16.msra.mxu0 0
    %893 = vmatprep.subr.bf16.mxu0 0
    %894 = vmatpush2.bf16.msra.mxu0 0
    %895 = vmatprep.subr.bf16.mxu0 0
    %896 = vmatpush2.bf16.msra.mxu0 0
    %897 = vmatprep.subr.bf16.mxu0 0
    %898 = vmatpush2.bf16.msra.mxu0 0
    %899 = vmatprep.subr.bf16.mxu0 0
    %900 = vmatpush2.bf16.msra.mxu0 0
    %901 = vmatprep.subr.bf16.mxu0 0
    %902 = vmatpush2.bf16.msra.mxu0 0
    %903 = vmatprep.subr.bf16.mxu0 0
    %904 = vmatpush2.bf16.msra.mxu0 0
    %905 = vmatprep.subr.bf16.mxu0 0
    %906 = vmatpush2.bf16.msra.mxu0 0
    %907 = vmatprep.mubr.bf16.mxu0 0
    %908 = vmatmul.mubr.bf16.gmra.mxu0 %v823
    %v909 = vpop.f32.mrf.mxu0
    %v910 = vadd.f32 0.0, %v909
    %v911 = vpop.f32.mrf.mxu0
    %v912 = vpop.f32.mrf.mxu0
    %v913 = vadd.f32 0.0, %v912
    %v914 = vpop.f32.mrf.mxu0
    %915 = vmatprep.mubr.bf16.mxu0 0
    %916 = vmatmul.mubr.bf16.gmra.mxu0 %v824
    %v917 = vpop.f32.mrf.mxu0
    %v918 = vadd.f32 0.0, %v917
    %v919 = vpop.f32.mrf.mxu0
    %v920 = vpop.f32.mrf.mxu0
    %v921 = vadd.f32 0.0, %v920
    %v922 = vpop.f32.mrf.mxu0
    %923 = vdwg.mxu0
    %v924 = vadd.f32 %v762, %v910
    %v925 = vadd.f32 %v765, %v913
    %v926 = vadd.f32 %v770, %v918
    %v927 = vadd.f32 %v773, %v921
    %v928 = vld [vmem:[%s5] sm:$0xf]
    %v929 = vld [vmem:[%s5 + $0x4] sm:$0xf]
    %v930 = vld [vmem:[%s5 + $0x8] sm:$0xf]
    %v931 = vld [vmem:[%s5 + $0xc] sm:$0xf]
    %v932 = vld [vmem:[%s5 + $0x10] sm:$0xf]
    %v933 = vld [vmem:[%s5 + $0x14] sm:$0xf]
    %v934 = vld [vmem:[%s5 + $0x18] sm:$0xf]
    %v935 = vld [vmem:[%s5 + $0x1c] sm:$0xf]
    %v944 = vunpack.c.l.b16 %v928
    %v945 = vunpack.c.l.b16 %v929
    %v946 = vunpack.c.l.b16 %v930
    %v947 = vunpack.c.l.b16 %v931
    %v948 = vunpack.c.l.b16 %v932
    %v949 = vunpack.c.l.b16 %v933
    %v950 = vunpack.c.l.b16 %v934
    %v951 = vunpack.c.l.b16 %v935
    %v952 = vpack.c.b16 %v945, %v944
    %v953 = vpack.c.b16 %v947, %v946
    %v954 = vpack.c.b16 %v949, %v948
    %v955 = vpack.c.b16 %v951, %v950
    %960 = vmatprep.subr.bf16.mxu0 0
    %961 = vmatpush1.bf16.msra.mxu0 0
    %962 = vmatprep.subr.bf16.mxu0 0
    %963 = vmatpush1.bf16.msra.mxu0 0
    %964 = vmatprep.subr.bf16.mxu0 0
    %965 = vmatpush1.bf16.msra.mxu0 0
    %966 = vmatprep.subr.bf16.mxu0 0
    %967 = vmatpush1.bf16.msra.mxu0 0
    %968 = vmatprep.subr.bf16.mxu0 0
    %969 = vmatpush1.bf16.msra.mxu0 %v955
    %970 = vmatprep.subr.bf16.mxu0 0
    %971 = vmatpush1.bf16.msra.mxu0 %v954
    %972 = vmatprep.subr.bf16.mxu0 0
    %973 = vmatpush1.bf16.msra.mxu0 %v953
    %974 = vmatprep.subr.bf16.mxu0 0
    %975 = vmatpush1.bf16.msra.mxu0 %v952
    %976 = vmatprep.subr.bf16.mxu0 0
    %977 = vmatpush2.bf16.msra.mxu0 0
    %978 = vmatprep.subr.bf16.mxu0 0
    %979 = vmatpush2.bf16.msra.mxu0 0
    %980 = vmatprep.subr.bf16.mxu0 0
    %981 = vmatpush2.bf16.msra.mxu0 0
    %982 = vmatprep.subr.bf16.mxu0 0
    %983 = vmatpush2.bf16.msra.mxu0 0
    %984 = vmatprep.subr.bf16.mxu0 0
    %985 = vmatpush2.bf16.msra.mxu0 0
    %986 = vmatprep.subr.bf16.mxu0 0
    %987 = vmatpush2.bf16.msra.mxu0 0
    %988 = vmatprep.subr.bf16.mxu0 0
    %989 = vmatpush2.bf16.msra.mxu0 0
    %990 = vmatprep.subr.bf16.mxu0 0
    %991 = vmatpush2.bf16.msra.mxu0 0
    %992 = vmatprep.mubr.bf16.mxu0 0
    %993 = vmatmul.mubr.bf16.gmra.mxu0 %v184
    %v994 = vpop.f32.mrf.mxu0
    %v995 = vadd.f32 0.0, %v994
    %v996 = vpop.f32.mrf.mxu0
    %v997 = vpop.f32.mrf.mxu0
    %v998 = vadd.f32 0.0, %v997
    %v999 = vpop.f32.mrf.mxu0
    %1000 = vmatprep.mubr.bf16.mxu0 0
    %1001 = vmatmul.mubr.bf16.gmra.mxu0 %v187
    %v1002 = vpop.f32.mrf.mxu0
    %v1003 = vadd.f32 0.0, %v1002
    %v1004 = vpop.f32.mrf.mxu0
    %v1005 = vpop.f32.mrf.mxu0
    %v1006 = vadd.f32 0.0, %v1005
    %v1007 = vpop.f32.mrf.mxu0
    %1008 = vdwg.mxu0
    %v1009 = vadd.f32 %v924, %v995
    %v1010 = vadd.f32 %v925, %v998
    %v1011 = vadd.f32 %v926, %v1003
    %v1012 = vadd.f32 %v927, %v1006
    %v1013 = vld [vmem:[%s4] sm:$0x1]
    %v1015 = vlaneseq
    %v1016 = vshrl.u32 %v1015, 7
    %v1017 = vsub.s32 0, %v1016
    %v1018 = vrot.slane %v1013, %v1017
    %v1020 = vadd.f32 %v1009, %v1018
    %v1021 = vadd.f32 %v1010, %v1018
    %v1022 = vadd.f32 %v1011, %v1018
    %v1023 = vadd.f32 %v1012, %v1018
    %v1024 = vmax.f32 %v1020, 0.0
    %v1025 = vmax.f32 %v1021, 0.0
    %v1026 = vmax.f32 %v1022, 0.0
    %v1027 = vmax.f32 %v1023, 0.0
    %1028 = vst [vmem:[#allocation8] sm:$0xff] %v1024
    %1029 = vst [vmem:[#allocation8 + $0x8] sm:$0xff] %v1025
    %1030 = vst [vmem:[#allocation8 + $0x10] sm:$0xff] %v1026
    %1031 = vst [vmem:[#allocation8 + $0x18] sm:$0xff] %v1027
    // Predicated region
    $region34: #{tpu_custom_call.1} parent=1 // pred_check
      _
    $region35: #{tpu_custom_call.1} parent=1 // pred_check_branch
      %1033 = sbr.rel (0) target = $region37
    $region36: #{tpu_custom_call.1} parent=1 // pred_region
      %s1035 = ssub.s32 512, 512
      %1036 = vsyncadd [#allocation5], %s1035
      %s1037 = sshll.u32 [#allocation8], 4
      %s1038 = int_to_ptr.vmem [resolvable:$true] %s1037
      %1043 = dma.vmem_to_hbm [thread:$0]  %s1038, 512, %s6, [#allocation5], 128, 128, 8
    $region37: #{tpu_custom_call.1} parent=1 // pred_fallthru
      _
    // Predicated region
    $region38: #{tpu_custom_call.1} parent=1 // pred_check
      _
    $region39: #{tpu_custom_call.1} parent=1 // pred_check_branch
      %1045 = sbr.rel (0) target = $region41
    $region40: #{tpu_custom_call.1} parent=1 // pred_region
      %1046 = dma.done [#allocation5], 512
    $region41: #{tpu_custom_call.1} parent=1 // pred_fallthru
      _
    %1047 = vsyncpa [#allocation4], 1
    %1048 = vsyncpa [#allocation7], 1
    %1049 = vsyncpa [#allocation5], 1

</llo_original>
